<compile_context>
chip_gen: v7x
topology: tpu7x:2x2x1
jax: 0.10.0
libtpu: 0.0.40
codegen_flags: <defaults>
</compile_context>

<pallas_src>
import functools

import jax
import jax.numpy as jnp
from jax.experimental import pallas as pl
from jax.experimental.pallas import tpu as pltpu

LN_EPS = 1e-5  # torch.nn.LayerNorm default


def _round_up(n, m):
    return ((n + m - 1) // m) * m


def _layernorm(h, gamma, beta, n_true):
    """Two-pass LayerNorm over the last axis (matches torch.nn.LayerNorm).

    `h` may carry zero-padded lanes beyond n_true; they are masked out of the
    variance and (because gamma/beta are zero-padded) remain exactly zero in
    the output.
    """
    n_lanes = h.shape[-1]
    inv_n = 1.0 / float(n_true)
    mu = jnp.sum(h, axis=-1, keepdims=True) * inv_n
    d = h - mu
    if n_lanes != n_true:
        mask = jax.lax.broadcasted_iota(jnp.int32, h.shape, h.ndim - 1) < n_true
        d = jnp.where(mask, d, 0.0)
    var = jnp.sum(d * d, axis=-1, keepdims=True) * inv_n
    return d * jax.lax.rsqrt(var + LN_EPS) * gamma + beta


def mlp_base_kernel(num_layers, n_in, n_hid, *refs):
    # refs = (x, ln0_g, ln0_b, w0, b0, ln1_g, ln1_b, [wh, bh, lnh_g, lnh_b], out)
    (x_ref, ln0_g_ref, ln0_b_ref, w0_ref, b0_ref,
     ln1_g_ref, ln1_b_ref) = refs[:7]
    out_ref = refs[-1]

    # ---- Input block: LayerNorm -> Linear -> LayerNorm -> ReLU ----
    h = x_ref[...].astype(jnp.float32)
    h = _layernorm(h, ln0_g_ref[...], ln0_b_ref[...], n_in)
    h = jnp.dot(h.astype(jnp.bfloat16), w0_ref[...],            # bf16 MXU matmul
                preferred_element_type=jnp.float32) + b0_ref[...]
    h = _layernorm(h, ln1_g_ref[...], ln1_b_ref[...], n_hid)
    h = jnp.maximum(h, 0.0)

    # ---- Hidden blocks: (Linear -> LayerNorm -> ReLU) x num_layers ----
    if num_layers > 0:
        wh_ref, bh_ref, lnh_g_ref, lnh_b_ref = refs[7:11]
        for i in range(num_layers):  # static unroll; num_layers is compile-time
            h = jnp.dot(h.astype(jnp.bfloat16), wh_ref[i],
                        preferred_element_type=jnp.float32) + bh_ref[i]
            h = _layernorm(h, lnh_g_ref[i], lnh_b_ref[i], n_hid)
            h = jnp.maximum(h, 0.0)

    out_ref[...] = h.astype(out_ref.dtype)


def _pad_last2(a, rows, cols):
    pad = [(0, 0)] * (a.ndim - 2) + [(0, rows - a.shape[-2]),
                                     (0, cols - a.shape[-1])]
    return jnp.pad(a, pad)


def prepare_mlp_base_params(params, num_layers):
    """One-time (init / param-update time) padding + bf16 casting.

    NOTE: the hidden-lane padding of every weight column / bias / gamma / beta
    MUST be zeros; that invariant is what keeps padded lanes exactly zero
    through the whole network.  Do not change it to ones-padding.
    """
    input_size, hidden_size = params["w0"].shape
    hid_pad = _round_up(hidden_size, 128)

    prepared = {
        "input_size": int(input_size),
        "hidden_size": int(hidden_size),
        "hid_pad": int(hid_pad),
        # Input LayerNorm params stay at the true input width (no lane pad).
        "ln0_g": params["ln0_g"].reshape(1, input_size).astype(jnp.float32),
        "ln0_b": params["ln0_b"].reshape(1, input_size).astype(jnp.float32),
        "w0": _pad_last2(params["w0"], input_size, hid_pad).astype(jnp.bfloat16),
        "b0": _pad_last2(params["b0"].reshape(1, -1), 1, hid_pad).astype(jnp.float32),
        "ln1_g": _pad_last2(params["ln1_g"].reshape(1, -1), 1, hid_pad).astype(jnp.float32),
        "ln1_b": _pad_last2(params["ln1_b"].reshape(1, -1), 1, hid_pad).astype(jnp.float32),
    }
    if num_layers > 0:
        prepared["wh"] = _pad_last2(params["wh"], hid_pad, hid_pad).astype(jnp.bfloat16)
        prepared["bh"] = _pad_last2(params["bh"], 1, hid_pad).astype(jnp.float32)
        prepared["lnh_g"] = _pad_last2(params["lnh_g"], 1, hid_pad).astype(jnp.float32)
        prepared["lnh_b"] = _pad_last2(params["lnh_b"], 1, hid_pad).astype(jnp.float32)
    return prepared


def mlp_base_forward(x, prepared, num_layers, out_dtype=jnp.bfloat16):
    """Fused MLPBase forward.

    Returns (batch, hid_pad) in `out_dtype`; columns [hidden_size:hid_pad] are
    exactly zero (keep the padded lane-dense layout for downstream consumers
    instead of slicing, which would add an extra HBM pass).
    """
    batch, input_size = x.shape
    assert input_size == prepared["input_size"]
    hidden_size = prepared["hidden_size"]
    hid_pad = prepared["hid_pad"]

    # Batch tile: multiple of 8 (sublane), large enough to amortize per-step
    # overhead, and chosen so the 1-D "parallel" grid has >= 2 steps whenever
    # batch allows (feeds both TensorCores on v7x).  No host-side batch pad;
    # Pallas handles the partial last tile (OOB rows never pollute valid rows
    # because every op here is row-wise).
    if batch <= 8:
        tm = _round_up(max(batch, 1), 8)
    else:
        tm = min(1024, _round_up(pl.cdiv(batch, 2), 8))
    # Keep double-buffered activation tiles + in-body temporaries modest.
    per_row_bytes = 4 * (2 * input_size + 8 * hid_pad) + 2 * 2 * hid_pad
    tm = max(8, min(tm, ((16 << 20) // max(per_row_bytes, 1)) // 8 * 8))
    grid = (pl.cdiv(batch, tm),)

    def resident2(shape):
        return pl.BlockSpec(shape, lambda i: (0, 0))

    def resident3(shape):
        return pl.BlockSpec(shape, lambda i: (0, 0, 0))

    args = [x, prepared["ln0_g"], prepared["ln0_b"], prepared["w0"],
            prepared["b0"], prepared["ln1_g"], prepared["ln1_b"]]
    in_specs = [
        pl.BlockSpec((tm, input_size), lambda i: (i, 0)),   # activations: tiled
        resident2((1, input_size)), resident2((1, input_size)),
        resident2((input_size, hid_pad)), resident2((1, hid_pad)),
        resident2((1, hid_pad)), resident2((1, hid_pad)),
    ]
    if num_layers > 0:
        args += [prepared["wh"], prepared["bh"],
                 prepared["lnh_g"], prepared["lnh_b"]]
        in_specs += [
            resident3((num_layers, hid_pad, hid_pad)),
            resident3((num_layers, 1, hid_pad)),
            resident3((num_layers, 1, hid_pad)),
            resident3((num_layers, 1, hid_pad)),
        ]

    out_spec = pl.BlockSpec((tm, hid_pad), lambda i: (i, 0))

    # VMEM budget.  Pallas double-buffers every input (even constant-index
    # ones), so resident weights/params are counted twice.  Clamp to the
    # actual hardware capacity (v7x only has 64 MiB).
    weight_bytes = 2 * 2 * (input_size * hid_pad + num_layers * hid_pad * hid_pad)
    small_bytes = 2 * 4 * (2 * input_size + (3 + 3 * num_layers) * hid_pad)
    act_bytes = 2 * tm * (4 * input_size + 2 * hid_pad)       # dbl-buffered in/out
    body_bytes = 8 * tm * hid_pad * 4                         # in-body temporaries
    budget = int(1.5 * (weight_bytes + small_bytes + act_bytes + body_bytes))
    try:
        vmem_cap = int(pltpu.get_tpu_info().vmem_capacity_bytes)
    except Exception:  # pragma: no cover - conservative (v7x-safe) fallback
        vmem_cap = 64 << 20
    vmem_limit = min(max(budget, 32 << 20), (vmem_cap * 7) // 8)

    kernel = functools.partial(mlp_base_kernel, num_layers, input_size,
                               hidden_size)
    return pl.pallas_call(
        kernel,
        out_shape=jax.ShapeDtypeStruct((batch, hid_pad), out_dtype),
        grid=grid,
        in_specs=in_specs,
        out_specs=out_spec,
        compiler_params=pltpu.CompilerParams(
            dimension_semantics=("parallel",),   # megacore split on v7x
            vmem_limit_bytes=vmem_limit,
        ),
    )(*args)


def _orthogonal(key, n_in, n_out, gain):
    """Deterministic orthogonal init (gain = sqrt(2) for ReLU); shape [in, out]."""
    big, small = max(n_in, n_out), min(n_in, n_out)
    a = jax.random.normal(key, (big, small), dtype=jnp.float32)
    q, r = jnp.linalg.qr(a)
    q = q * jnp.sign(jnp.diagonal(r))[None, :]
    if n_in < n_out:
        q = q.T
    return gain * q  # [n_in, n_out]


def init_mlp_base_params(key, input_size, hidden_size, num_layers):
    gain = 2.0 ** 0.5  # nn.init.calculate_gain('relu')
    keys = jax.random.split(key, 1 + max(num_layers, 1))
    params = {
        "ln0_g": jnp.ones((1, input_size), jnp.float32),
        "ln0_b": jnp.zeros((1, input_size), jnp.float32),
        "w0": _orthogonal(keys[0], input_size, hidden_size, gain),
        "b0": jnp.zeros((1, hidden_size), jnp.float32),
        "ln1_g": jnp.ones((1, hidden_size), jnp.float32),
        "ln1_b": jnp.zeros((1, hidden_size), jnp.float32),
    }
    if num_layers > 0:
        params["wh"] = jnp.stack(
            [_orthogonal(keys[1 + i], hidden_size, hidden_size, gain)
             for i in range(num_layers)], axis=0)
    else:
        params["wh"] = jnp.zeros((0, hidden_size, hidden_size), jnp.float32)
    params["bh"] = jnp.zeros((num_layers, 1, hidden_size), jnp.float32)
    params["lnh_g"] = jnp.ones((num_layers, 1, hidden_size), jnp.float32)
    params["lnh_b"] = jnp.zeros((num_layers, 1, hidden_size), jnp.float32)
    return params


def mlp_base_reference(x, params, num_layers, matmul_dtype=None):
    """Pure-JAX reference.  matmul_dtype=jnp.bfloat16 mirrors the kernel's
    bf16 MXU matmuls (f32 accumulation); None keeps everything f32."""

    def ln(h, g, b):
        mu = jnp.mean(h, axis=-1, keepdims=True)
        var = jnp.mean((h - mu) * (h - mu), axis=-1, keepdims=True)
        return (h - mu) * jax.lax.rsqrt(var + LN_EPS) * g + b

    def mm(a, w):
        if matmul_dtype is None:
            return a @ w
        return jnp.dot(a.astype(matmul_dtype), w.astype(matmul_dtype),
                       preferred_element_type=jnp.float32)

    h = ln(x.astype(jnp.float32), params["ln0_g"], params["ln0_b"])
    h = mm(h, params["w0"]) + params["b0"]
    h = jnp.maximum(ln(h, params["ln1_g"], params["ln1_b"]), 0.0)
    for i in range(num_layers):
        h = mm(h, params["wh"][i]) + params["bh"][i]
        h = jnp.maximum(ln(h, params["lnh_g"][i], params["lnh_b"][i]), 0.0)
    return h


def _check(x, params, prepared, num_layers, hidden_size):
    out = jax.block_until_ready(mlp_base_forward(x, prepared, num_layers))
    batch = x.shape[0]
    assert out.shape == (batch, prepared["hid_pad"])
    # Padded lanes must be exactly zero (invariant that lets callers keep the
    # lane-dense padded layout without slicing).
    if prepared["hid_pad"] > hidden_size:
        assert jnp.all(out[:, hidden_size:] == 0), "padded lanes not zero"
    got = out[:, :hidden_size].astype(jnp.float32)   # test-only slice
    ref_bf16 = mlp_base_reference(x, params, num_layers,
                                  matmul_dtype=jnp.bfloat16)
    assert jnp.allclose(got, ref_bf16, atol=3e-2, rtol=3e-2), \
        "mismatch vs bf16-matmul reference"
    ref_f32 = mlp_base_reference(x, params, num_layers)
    assert jnp.allclose(got, ref_f32, atol=2e-1, rtol=2e-1), \
        "mismatch vs f32 reference"


if __name__ == "__main__":
    input_size, hidden_size, num_layers = 32, 64, 2

    key = jax.random.PRNGKey(0)
    k_x, k_x2, k_p = jax.random.split(key, 3)
    params = init_mlp_base_params(k_p, input_size, hidden_size, num_layers)
    # One-time padding / bf16 casting, hoisted out of the forward path.
    prepared = prepare_mlp_base_params(params, num_layers)

    # Main case: batch divisible by the tile, 2 grid steps.
    x = jax.random.normal(k_x, (64, input_size), dtype=jnp.float32)
    _check(x, params, prepared, num_layers, hidden_size)

    # Partial-tile case: batch not a multiple of the tile (exercises cdiv grid).
    x2 = jax.random.normal(k_x2, (10, input_size), dtype=jnp.float32)
    _check(x2, params, prepared, num_layers, hidden_size)

    print("KERNEL_OK")
</pallas_src>

<mosaic_0001>
module attributes {stable_mosaic.version = 11 : i64} {
  func.func @mlp_base_kernel(%arg0: i32, %arg1: memref<32x32xf32, #tpu.memory_space<vmem>>, %arg2: memref<1x32xf32, #tpu.memory_space<vmem>>, %arg3: memref<1x32xf32, #tpu.memory_space<vmem>>, %arg4: memref<32x128xbf16, #tpu.memory_space<vmem>>, %arg5: memref<1x128xf32, #tpu.memory_space<vmem>>, %arg6: memref<1x128xf32, #tpu.memory_space<vmem>>, %arg7: memref<1x128xf32, #tpu.memory_space<vmem>>, %arg8: memref<2x128x128xbf16, #tpu.memory_space<vmem>>, %arg9: memref<2x1x128xf32, #tpu.memory_space<vmem>>, %arg10: memref<2x1x128xf32, #tpu.memory_space<vmem>>, %arg11: memref<2x1x128xf32, #tpu.memory_space<vmem>>, %arg12: memref<32x128xbf16, #tpu.memory_space<vmem>>) attributes {dimension_semantics = [#tpu.dimension_semantics<parallel>], iteration_bounds = array<i64: 2>, scalar_prefetch = 0 : i64, scratch_operands = 0 : i64, tpu.core_type = #tpu.core_type<tc>, window_params = [{transform_indices = @transform_0, window_bounds = array<i64: 32, 32>}, {pipeline_mode = #tpu.pipeline_mode<synchronous>, transform_indices = @transform_1, window_bounds = array<i64: 1, 32>}, {pipeline_mode = #tpu.pipeline_mode<synchronous>, transform_indices = @transform_2, window_bounds = array<i64: 1, 32>}, {pipeline_mode = #tpu.pipeline_mode<synchronous>, transform_indices = @transform_3, window_bounds = array<i64: 32, 128>}, {pipeline_mode = #tpu.pipeline_mode<synchronous>, transform_indices = @transform_4, window_bounds = array<i64: 1, 128>}, {pipeline_mode = #tpu.pipeline_mode<synchronous>, transform_indices = @transform_5, window_bounds = array<i64: 1, 128>}, {pipeline_mode = #tpu.pipeline_mode<synchronous>, transform_indices = @transform_6, window_bounds = array<i64: 1, 128>}, {pipeline_mode = #tpu.pipeline_mode<synchronous>, transform_indices = @transform_7, window_bounds = array<i64: 2, 128, 128>}, {pipeline_mode = #tpu.pipeline_mode<synchronous>, transform_indices = @transform_8, window_bounds = array<i64: 2, 1, 128>}, {pipeline_mode = #tpu.pipeline_mode<synchronous>, transform_indices = @transform_9, window_bounds = array<i64: 2, 1, 128>}, {pipeline_mode = #tpu.pipeline_mode<synchronous>, transform_indices = @transform_10, window_bounds = array<i64: 2, 1, 128>}, {transform_indices = @transform_11, window_bounds = array<i64: 32, 128>}]} {
    %c0 = arith.constant 0 : index
    %c0_0 = arith.constant 0 : index
    %0 = vector.load %arg1[%c0, %c0_0] : memref<32x32xf32, #tpu.memory_space<vmem>>, vector<32x32xf32>
    %c0_1 = arith.constant 0 : index
    %c0_2 = arith.constant 0 : index
    %1 = vector.load %arg2[%c0_1, %c0_2] : memref<1x32xf32, #tpu.memory_space<vmem>>, vector<1x32xf32>
    %c0_3 = arith.constant 0 : index
    %c0_4 = arith.constant 0 : index
    %2 = vector.load %arg3[%c0_3, %c0_4] : memref<1x32xf32, #tpu.memory_space<vmem>>, vector<1x32xf32>
    %cst = arith.constant dense<0.000000e+00> : vector<32xf32>
    %3 = vector.multi_reduction <add>, %0, %cst [1] : vector<32x32xf32> to vector<32xf32>
    %4 = vector.shape_cast %3 : vector<32xf32> to vector<32x1xf32>
    %cst_5 = arith.constant 3.125000e-02 : f32
    %5 = vector.broadcast %cst_5 : f32 to vector<32x1xf32>
    %6 = arith.mulf %4, %5 : vector<32x1xf32>
    %7 = vector.broadcast %6 : vector<32x1xf32> to vector<32x32xf32>
    %8 = arith.subf %0, %7 : vector<32x32xf32>
    %9 = arith.mulf %8, %8 : vector<32x32xf32>
    %cst_6 = arith.constant dense<0.000000e+00> : vector<32xf32>
    %10 = vector.multi_reduction <add>, %9, %cst_6 [1] : vector<32x32xf32> to vector<32xf32>
    %11 = vector.shape_cast %10 : vector<32xf32> to vector<32x1xf32>
    %cst_7 = arith.constant 3.125000e-02 : f32
    %12 = vector.broadcast %cst_7 : f32 to vector<32x1xf32>
    %13 = arith.mulf %11, %12 : vector<32x1xf32>
    %cst_8 = arith.constant 9.99999974E-6 : f32
    %14 = vector.broadcast %cst_8 : f32 to vector<32x1xf32>
    %15 = arith.addf %13, %14 : vector<32x1xf32>
    %16 = math.rsqrt %15 : vector<32x1xf32>
    %17 = vector.broadcast %16 : vector<32x1xf32> to vector<32x32xf32>
    %18 = arith.mulf %8, %17 : vector<32x32xf32>
    %19 = vector.broadcast %1 : vector<1x32xf32> to vector<32x32xf32>
    %20 = arith.mulf %18, %19 : vector<32x32xf32>
    %21 = vector.broadcast %2 : vector<1x32xf32> to vector<32x32xf32>
    %22 = arith.addf %20, %21 : vector<32x32xf32>
    %23 = arith.truncf %22 : vector<32x32xf32> to vector<32x32xbf16>
    %c0_9 = arith.constant 0 : index
    %c0_10 = arith.constant 0 : index
    %24 = vector.load %arg4[%c0_9, %c0_10] : memref<32x128xbf16, #tpu.memory_space<vmem>>, vector<32x128xbf16>
    %cst_11 = arith.constant dense<0.000000e+00> : vector<32x128xf32>
    %25 = tpu.matmul %23, %24, %cst_11 {dimension_numbers = #tpu.dot_dimension_numbers<[1], [0], [0], [1], [0, 0, 1, 1], [], []>} : vector<32x32xbf16>, vector<32x128xbf16>, vector<32x128xf32> -> vector<32x128xf32>
    %c0_12 = arith.constant 0 : index
    %c0_13 = arith.constant 0 : index
    %26 = vector.load %arg5[%c0_12, %c0_13] : memref<1x128xf32, #tpu.memory_space<vmem>>, vector<1x128xf32>
    %27 = vector.broadcast %26 : vector<1x128xf32> to vector<32x128xf32>
    %28 = arith.addf %25, %27 : vector<32x128xf32>
    %c0_14 = arith.constant 0 : index
    %c0_15 = arith.constant 0 : index
    %29 = vector.load %arg6[%c0_14, %c0_15] : memref<1x128xf32, #tpu.memory_space<vmem>>, vector<1x128xf32>
    %c0_16 = arith.constant 0 : index
    %c0_17 = arith.constant 0 : index
    %30 = vector.load %arg7[%c0_16, %c0_17] : memref<1x128xf32, #tpu.memory_space<vmem>>, vector<1x128xf32>
    %cst_18 = arith.constant dense<0.000000e+00> : vector<32xf32>
    %31 = vector.multi_reduction <add>, %28, %cst_18 [1] : vector<32x128xf32> to vector<32xf32>
    %32 = vector.shape_cast %31 : vector<32xf32> to vector<32x1xf32>
    %cst_19 = arith.constant 1.562500e-02 : f32
    %33 = vector.broadcast %cst_19 : f32 to vector<32x1xf32>
    %34 = arith.mulf %32, %33 : vector<32x1xf32>
    %35 = vector.broadcast %34 : vector<32x1xf32> to vector<32x128xf32>
    %36 = arith.subf %28, %35 : vector<32x128xf32>
    %37 = tpu.iota {dimensions = array<i32: 1>} : vector<32x128xi32>
    %c64_i32 = arith.constant 64 : i32
    %38 = vector.broadcast %c64_i32 : i32 to vector<32x128xi32>
    %39 = arith.cmpi slt, %37, %38 : vector<32x128xi32>
    %cst_20 = arith.constant 0.000000e+00 : f32
    %40 = vector.broadcast %cst_20 : f32 to vector<32x128xf32>
    %41 = arith.select %39, %36, %40 : vector<32x128xi1>, vector<32x128xf32>
    %42 = arith.mulf %41, %41 : vector<32x128xf32>
    %cst_21 = arith.constant dense<0.000000e+00> : vector<32xf32>
    %43 = vector.multi_reduction <add>, %42, %cst_21 [1] : vector<32x128xf32> to vector<32xf32>
    %44 = vector.shape_cast %43 : vector<32xf32> to vector<32x1xf32>
    %cst_22 = arith.constant 1.562500e-02 : f32
    %45 = vector.broadcast %cst_22 : f32 to vector<32x1xf32>
    %46 = arith.mulf %44, %45 : vector<32x1xf32>
    %cst_23 = arith.constant 9.99999974E-6 : f32
    %47 = vector.broadcast %cst_23 : f32 to vector<32x1xf32>
    %48 = arith.addf %46, %47 : vector<32x1xf32>
    %49 = math.rsqrt %48 : vector<32x1xf32>
    %50 = vector.broadcast %49 : vector<32x1xf32> to vector<32x128xf32>
    %51 = arith.mulf %41, %50 : vector<32x128xf32>
    %52 = vector.broadcast %29 : vector<1x128xf32> to vector<32x128xf32>
    %53 = arith.mulf %51, %52 : vector<32x128xf32>
    %54 = vector.broadcast %30 : vector<1x128xf32> to vector<32x128xf32>
    %55 = arith.addf %53, %54 : vector<32x128xf32>
    %cst_24 = arith.constant 0.000000e+00 : f32
    %56 = vector.broadcast %cst_24 : f32 to vector<32x128xf32>
    %57 = arith.maximumf %55, %56 : vector<32x128xf32>
    %58 = arith.truncf %57 : vector<32x128xf32> to vector<32x128xbf16>
    %c0_25 = arith.constant 0 : index
    %c0_26 = arith.constant 0 : index
    %c0_27 = arith.constant 0 : index
    %59 = vector.load %arg8[%c0_25, %c0_26, %c0_27] : memref<2x128x128xbf16, #tpu.memory_space<vmem>>, vector<1x128x128xbf16>
    %60 = vector.shape_cast %59 : vector<1x128x128xbf16> to vector<128x128xbf16>
    %cst_28 = arith.constant dense<0.000000e+00> : vector<32x128xf32>
    %61 = tpu.matmul %58, %60, %cst_28 {dimension_numbers = #tpu.dot_dimension_numbers<[1], [0], [0], [1], [0, 0, 1, 1], [], []>} : vector<32x128xbf16>, vector<128x128xbf16>, vector<32x128xf32> -> vector<32x128xf32>
    %c0_29 = arith.constant 0 : index
    %c0_30 = arith.constant 0 : index
    %c0_31 = arith.constant 0 : index
    %62 = vector.load %arg9[%c0_29, %c0_30, %c0_31] : memref<2x1x128xf32, #tpu.memory_space<vmem>>, vector<1x1x128xf32>
    %63 = vector.shape_cast %62 : vector<1x1x128xf32> to vector<1x128xf32>
    %64 = vector.broadcast %63 : vector<1x128xf32> to vector<32x128xf32>
    %65 = arith.addf %61, %64 : vector<32x128xf32>
    %c0_32 = arith.constant 0 : index
    %c0_33 = arith.constant 0 : index
    %c0_34 = arith.constant 0 : index
    %66 = vector.load %arg10[%c0_32, %c0_33, %c0_34] : memref<2x1x128xf32, #tpu.memory_space<vmem>>, vector<1x1x128xf32>
    %67 = vector.shape_cast %66 : vector<1x1x128xf32> to vector<1x128xf32>
    %c0_35 = arith.constant 0 : index
    %c0_36 = arith.constant 0 : index
    %c0_37 = arith.constant 0 : index
    %68 = vector.load %arg11[%c0_35, %c0_36, %c0_37] : memref<2x1x128xf32, #tpu.memory_space<vmem>>, vector<1x1x128xf32>
    %69 = vector.shape_cast %68 : vector<1x1x128xf32> to vector<1x128xf32>
    %cst_38 = arith.constant dense<0.000000e+00> : vector<32xf32>
    %70 = vector.multi_reduction <add>, %65, %cst_38 [1] : vector<32x128xf32> to vector<32xf32>
    %71 = vector.shape_cast %70 : vector<32xf32> to vector<32x1xf32>
    %cst_39 = arith.constant 1.562500e-02 : f32
    %72 = vector.broadcast %cst_39 : f32 to vector<32x1xf32>
    %73 = arith.mulf %71, %72 : vector<32x1xf32>
    %74 = vector.broadcast %73 : vector<32x1xf32> to vector<32x128xf32>
    %75 = arith.subf %65, %74 : vector<32x128xf32>
    %76 = tpu.iota {dimensions = array<i32: 1>} : vector<32x128xi32>
    %c64_i32_40 = arith.constant 64 : i32
    %77 = vector.broadcast %c64_i32_40 : i32 to vector<32x128xi32>
    %78 = arith.cmpi slt, %76, %77 : vector<32x128xi32>
    %cst_41 = arith.constant 0.000000e+00 : f32
    %79 = vector.broadcast %cst_41 : f32 to vector<32x128xf32>
    %80 = arith.select %78, %75, %79 : vector<32x128xi1>, vector<32x128xf32>
    %81 = arith.mulf %80, %80 : vector<32x128xf32>
    %cst_42 = arith.constant dense<0.000000e+00> : vector<32xf32>
    %82 = vector.multi_reduction <add>, %81, %cst_42 [1] : vector<32x128xf32> to vector<32xf32>
    %83 = vector.shape_cast %82 : vector<32xf32> to vector<32x1xf32>
    %cst_43 = arith.constant 1.562500e-02 : f32
    %84 = vector.broadcast %cst_43 : f32 to vector<32x1xf32>
    %85 = arith.mulf %83, %84 : vector<32x1xf32>
    %cst_44 = arith.constant 9.99999974E-6 : f32
    %86 = vector.broadcast %cst_44 : f32 to vector<32x1xf32>
    %87 = arith.addf %85, %86 : vector<32x1xf32>
    %88 = math.rsqrt %87 : vector<32x1xf32>
    %89 = vector.broadcast %88 : vector<32x1xf32> to vector<32x128xf32>
    %90 = arith.mulf %80, %89 : vector<32x128xf32>
    %91 = vector.broadcast %67 : vector<1x128xf32> to vector<32x128xf32>
    %92 = arith.mulf %90, %91 : vector<32x128xf32>
    %93 = vector.broadcast %69 : vector<1x128xf32> to vector<32x128xf32>
    %94 = arith.addf %92, %93 : vector<32x128xf32>
    %cst_45 = arith.constant 0.000000e+00 : f32
    %95 = vector.broadcast %cst_45 : f32 to vector<32x128xf32>
    %96 = arith.maximumf %94, %95 : vector<32x128xf32>
    %97 = arith.truncf %96 : vector<32x128xf32> to vector<32x128xbf16>
    %c1 = arith.constant 1 : index
    %c0_46 = arith.constant 0 : index
    %c0_47 = arith.constant 0 : index
    %98 = vector.load %arg8[%c1, %c0_46, %c0_47] : memref<2x128x128xbf16, #tpu.memory_space<vmem>>, vector<1x128x128xbf16>
    %99 = vector.shape_cast %98 : vector<1x128x128xbf16> to vector<128x128xbf16>
    %cst_48 = arith.constant dense<0.000000e+00> : vector<32x128xf32>
    %100 = tpu.matmul %97, %99, %cst_48 {dimension_numbers = #tpu.dot_dimension_numbers<[1], [0], [0], [1], [0, 0, 1, 1], [], []>} : vector<32x128xbf16>, vector<128x128xbf16>, vector<32x128xf32> -> vector<32x128xf32>
    %c1_49 = arith.constant 1 : index
    %c0_50 = arith.constant 0 : index
    %c0_51 = arith.constant 0 : index
    %101 = vector.load %arg9[%c1_49, %c0_50, %c0_51] : memref<2x1x128xf32, #tpu.memory_space<vmem>>, vector<1x1x128xf32>
    %102 = vector.shape_cast %101 : vector<1x1x128xf32> to vector<1x128xf32>
    %103 = vector.broadcast %102 : vector<1x128xf32> to vector<32x128xf32>
    %104 = arith.addf %100, %103 : vector<32x128xf32>
    %c1_52 = arith.constant 1 : index
    %c0_53 = arith.constant 0 : index
    %c0_54 = arith.constant 0 : index
    %105 = vector.load %arg10[%c1_52, %c0_53, %c0_54] : memref<2x1x128xf32, #tpu.memory_space<vmem>>, vector<1x1x128xf32>
    %106 = vector.shape_cast %105 : vector<1x1x128xf32> to vector<1x128xf32>
    %c1_55 = arith.constant 1 : index
    %c0_56 = arith.constant 0 : index
    %c0_57 = arith.constant 0 : index
    %107 = vector.load %arg11[%c1_55, %c0_56, %c0_57] : memref<2x1x128xf32, #tpu.memory_space<vmem>>, vector<1x1x128xf32>
    %108 = vector.shape_cast %107 : vector<1x1x128xf32> to vector<1x128xf32>
    %cst_58 = arith.constant dense<0.000000e+00> : vector<32xf32>
    %109 = vector.multi_reduction <add>, %104, %cst_58 [1] : vector<32x128xf32> to vector<32xf32>
    %110 = vector.shape_cast %109 : vector<32xf32> to vector<32x1xf32>
    %cst_59 = arith.constant 1.562500e-02 : f32
    %111 = vector.broadcast %cst_59 : f32 to vector<32x1xf32>
    %112 = arith.mulf %110, %111 : vector<32x1xf32>
    %113 = vector.broadcast %112 : vector<32x1xf32> to vector<32x128xf32>
    %114 = arith.subf %104, %113 : vector<32x128xf32>
    %115 = tpu.iota {dimensions = array<i32: 1>} : vector<32x128xi32>
    %c64_i32_60 = arith.constant 64 : i32
    %116 = vector.broadcast %c64_i32_60 : i32 to vector<32x128xi32>
    %117 = arith.cmpi slt, %115, %116 : vector<32x128xi32>
    %cst_61 = arith.constant 0.000000e+00 : f32
    %118 = vector.broadcast %cst_61 : f32 to vector<32x128xf32>
    %119 = arith.select %117, %114, %118 : vector<32x128xi1>, vector<32x128xf32>
    %120 = arith.mulf %119, %119 : vector<32x128xf32>
    %cst_62 = arith.constant dense<0.000000e+00> : vector<32xf32>
    %121 = vector.multi_reduction <add>, %120, %cst_62 [1] : vector<32x128xf32> to vector<32xf32>
    %122 = vector.shape_cast %121 : vector<32xf32> to vector<32x1xf32>
    %cst_63 = arith.constant 1.562500e-02 : f32
    %123 = vector.broadcast %cst_63 : f32 to vector<32x1xf32>
    %124 = arith.mulf %122, %123 : vector<32x1xf32>
    %cst_64 = arith.constant 9.99999974E-6 : f32
    %125 = vector.broadcast %cst_64 : f32 to vector<32x1xf32>
    %126 = arith.addf %124, %125 : vector<32x1xf32>
    %127 = math.rsqrt %126 : vector<32x1xf32>
    %128 = vector.broadcast %127 : vector<32x1xf32> to vector<32x128xf32>
    %129 = arith.mulf %119, %128 : vector<32x128xf32>
    %130 = vector.broadcast %106 : vector<1x128xf32> to vector<32x128xf32>
    %131 = arith.mulf %129, %130 : vector<32x128xf32>
    %132 = vector.broadcast %108 : vector<1x128xf32> to vector<32x128xf32>
    %133 = arith.addf %131, %132 : vector<32x128xf32>
    %cst_65 = arith.constant 0.000000e+00 : f32
    %134 = vector.broadcast %cst_65 : f32 to vector<32x128xf32>
    %135 = arith.maximumf %133, %134 : vector<32x128xf32>
    %136 = arith.truncf %135 : vector<32x128xf32> to vector<32x128xbf16>
    %c0_66 = arith.constant 0 : index
    %c0_67 = arith.constant 0 : index
    %137 = vector.load %arg12[%c0_66, %c0_67] : memref<32x128xbf16, #tpu.memory_space<vmem>>, vector<32x128xbf16>
    tpu.vector_store %arg12[%c0_66, %c0_67], %136 {strides = array<i32>} : memref<32x128xbf16, #tpu.memory_space<vmem>>, vector<32x128xbf16>,
    return
  }
  func.func @transform_0(%arg0: i32) -> (i32, i32) {
    %c0_i32 = arith.constant 0 : i32
    %c0_i32_0 = arith.constant 0 : i32
    return %arg0, %c0_i32 : i32, i32
  }
  func.func @transform_1(%arg0: i32) -> (i32, i32) {
    %c0_i32 = arith.constant 0 : i32
    %c0_i32_0 = arith.constant 0 : i32
    %c0_i32_1 = arith.constant 0 : i32
    return %c0_i32, %c0_i32_0 : i32, i32
  }
  func.func @transform_2(%arg0: i32) -> (i32, i32) {
    %c0_i32 = arith.constant 0 : i32
    %c0_i32_0 = arith.constant 0 : i32
    %c0_i32_1 = arith.constant 0 : i32
    return %c0_i32, %c0_i32_0 : i32, i32
  }
  func.func @transform_3(%arg0: i32) -> (i32, i32) {
    %c0_i32 = arith.constant 0 : i32
    %c0_i32_0 = arith.constant 0 : i32
    %c0_i32_1 = arith.constant 0 : i32
    return %c0_i32, %c0_i32_0 : i32, i32
  }
  func.func @transform_4(%arg0: i32) -> (i32, i32) {
    %c0_i32 = arith.constant 0 : i32
    %c0_i32_0 = arith.constant 0 : i32
    %c0_i32_1 = arith.constant 0 : i32
    return %c0_i32, %c0_i32_0 : i32, i32
  }
  func.func @transform_5(%arg0: i32) -> (i32, i32) {
    %c0_i32 = arith.constant 0 : i32
    %c0_i32_0 = arith.constant 0 : i32
    %c0_i32_1 = arith.constant 0 : i32
    return %c0_i32, %c0_i32_0 : i32, i32
  }
  func.func @transform_6(%arg0: i32) -> (i32, i32) {
    %c0_i32 = arith.constant 0 : i32
    %c0_i32_0 = arith.constant 0 : i32
    %c0_i32_1 = arith.constant 0 : i32
    return %c0_i32, %c0_i32_0 : i32, i32
  }
  func.func @transform_7(%arg0: i32) -> (i32, i32, i32) {
    %c0_i32 = arith.constant 0 : i32
    %c0_i32_0 = arith.constant 0 : i32
    %c0_i32_1 = arith.constant 0 : i32
    %c0_i32_2 = arith.constant 0 : i32
    return %c0_i32, %c0_i32_0, %c0_i32_1 : i32, i32, i32
  }
  func.func @transform_8(%arg0: i32) -> (i32, i32, i32) {
    %c0_i32 = arith.constant 0 : i32
    %c0_i32_0 = arith.constant 0 : i32
    %c0_i32_1 = arith.constant 0 : i32
    %c0_i32_2 = arith.constant 0 : i32
    return %c0_i32, %c0_i32_0, %c0_i32_1 : i32, i32, i32
  }
  func.func @transform_9(%arg0: i32) -> (i32, i32, i32) {
    %c0_i32 = arith.constant 0 : i32
    %c0_i32_0 = arith.constant 0 : i32
    %c0_i32_1 = arith.constant 0 : i32
    %c0_i32_2 = arith.constant 0 : i32
    return %c0_i32, %c0_i32_0, %c0_i32_1 : i32, i32, i32
  }
  func.func @transform_10(%arg0: i32) -> (i32, i32, i32) {
    %c0_i32 = arith.constant 0 : i32
    %c0_i32_0 = arith.constant 0 : i32
    %c0_i32_1 = arith.constant 0 : i32
    %c0_i32_2 = arith.constant 0 : i32
    return %c0_i32, %c0_i32_0, %c0_i32_1 : i32, i32, i32
  }
  func.func @transform_11(%arg0: i32) -> (i32, i32) {
    %c0_i32 = arith.constant 0 : i32
    %c0_i32_0 = arith.constant 0 : i32
    return %arg0, %c0_i32 : i32, i32
  }
}

</mosaic_0001>

<llo_original>
// kernel: tpu_custom_call.1
$region0: #{tpu_custom_call.1}
  #allocation0 [shape = 'u32[]', space=smem, size = 0x4, offset = 0x4, fixed_abs, tag = 'smem constant byte address 0x4 - core index']
  #allocation1 [shape = 'u32[144,128]{1,0:T(1,128)}', space=vmem, size = 0x12000, scoped, tag = 'internal scratch']
  %s0 = inlined_call_operand.vmem [shape: f32[64,32], index: 0, kind: input, shape index: {}]
  %s1 = inlined_call_operand.vmem [shape: f32[1,32], index: 1, kind: input, shape index: {}]
  %s2 = inlined_call_operand.vmem [shape: f32[1,32], index: 2, kind: input, shape index: {}]
  %s3 = inlined_call_operand.vmem [shape: bf16[32,128], index: 3, kind: input, shape index: {}]
  %s4 = inlined_call_operand.vmem [shape: f32[1,128], index: 4, kind: input, shape index: {}]
  %s5 = inlined_call_operand.vmem [shape: f32[1,128], index: 5, kind: input, shape index: {}]
  %s6 = inlined_call_operand.vmem [shape: f32[1,128], index: 6, kind: input, shape index: {}]
  %s7 = inlined_call_operand.hbm [shape: bf16[2,128,128], index: 7, kind: input, shape index: {}]
  %s8 = inlined_call_operand.vmem [shape: f32[2,1,128], index: 8, kind: input, shape index: {}]
  %s9 = inlined_call_operand.vmem [shape: f32[2,1,128], index: 9, kind: input, shape index: {}]
  %s10 = inlined_call_operand.vmem [shape: f32[2,1,128], index: 10, kind: input, shape index: {}]
  %s11 = inlined_call_operand.hbm [shape: bf16[64,128], index: 11, kind: output, shape index: {}]
  %s12 = sld [smem:[#allocation0]]
  $region81: #{tpu_custom_call.1} parent=0
    _
  %s14 = ssub.s32 1, %s12
  %s15 = scalar_select 0, %s14, %s12
  $region1: #{tpu_custom_call.1} parent=0
    #allocation2 [shape = 'u8[65536]{0}', space=vmem, size = 0x10000, scoped, tag = 'input window, operand 7, single buffered']
    #allocation3 [shape = 's32[2]{0}', space=sflag, size = 0x8, scoped, tag = 'scoped memory for tpu_custom_call.1']
    #allocation4 [shape = 's32[2]{0}', space=sflag, size = 0x8, scoped, tag = 'scoped memory for tpu_custom_call.1']
    #allocation5 [shape = 'u8[16384]{0}', space=vmem, size = 0x4000, scoped, tag = 'output window, operand 0']
    %16 = vsyncpa [#allocation3], 0
    %17 = vsyncpa [#allocation4], 0
    %s18 = scalar_lea.sflag [#allocation4], 1
    %19 = vsyncpa %s18, 0
    loop: start=0, step=1, limit=4
    $region2: #{tpu_custom_call.1} parent=1 // loop_pre_header
      _
    $region3: #{tpu_custom_call.1} parent=1 // loop_header
      %s21 = sphi 0, %s25
      %p22 = scmp.ge.s32.totalorder %s21, 4
      %s31 = sphi 0, %s33
      %s34 = sphi 0, %s31
      %s35 = sphi 0, %s34
      %s51 = sphi 0, %s35
      %s55 = sphi 0, %s55
      %s57 = sphi 0, %s55
      %s58 = sphi 0, %s57
      %s72 = sphi 0, %s58
      %s76 = sphi 0, %s76
      %s78 = sphi 0, %s76
      %s79 = sphi 0, %s78
      %s93 = sphi 0, %s79
      %s97 = sphi 0, %s97
      %s99 = sphi 0, %s97
      %s100 = sphi 0, %s99
      %s114 = sphi 0, %s100
      %s118 = sphi 0, %s118
      %s120 = sphi 0, %s118
      %s121 = sphi 0, %s120
      %s135 = sphi 0, %s121
      %s139 = sphi 0, %s139
      %s141 = sphi 0, %s139
      %s142 = sphi 0, %s141
      %s156 = sphi 0, %s142
      %s160 = sphi 0, %s160
      %s162 = sphi 0, %s160
      %s163 = sphi 0, %s162
      %s177 = sphi 0, %s163
      %s181 = sphi 0, %s181
      %s183 = sphi 0, %s181
      %s184 = sphi 0, %s183
      %s198 = sphi 0, %s184
      %s202 = sphi 0, %s202
      %s204 = sphi 0, %s202
      %s205 = sphi 0, %s204
      %s219 = sphi 0, %s205
      %s223 = sphi 0, %s223
      %s225 = sphi 0, %s223
      %s226 = sphi 0, %s225
      %s240 = sphi 0, %s226
      %s244 = sphi 0, %s244
      %s246 = sphi 0, %s244
      %s247 = sphi 0, %s246
      %s261 = sphi 0, %s247
      %s267 = sphi 0, %s269
      %s270 = sphi 0, %s267
      %s271 = sphi 0, %s270
      %s287 = sphi 0, %s271
    $region4: #{tpu_custom_call.1} parent=1 // loop_header_branch
      %24 = sbr.rel (%p22) target = $region8
    $region5: #{tpu_custom_call.1} parent=1 // loop_body
      %s26 = ssub.s32 %s21, 1
      %s27 = ssub.s32 %s21, 2
      %s28 = sadd.s32 %s21, 1
      %s29 = ssub.s32 %s21, %s28
      %p30 = scmp.eq.s32.totalorder %s29, 0
      %s32 = sadd.s32 %s31, 1
      %s33 = scalar_select %p30, %s31, %s32
      %p36 = pneg %p30
      %p37 = scmp.eq.s32.totalorder %s21, 1
      %p38 = por %p36, %p37
      %p39 = scmp.ne.s32.totalorder %s31, %s34
      %p40 = scmp.eq.s32.totalorder %s21, 0
      %p41 = por %p39, %p40
      %p42 = scmp.ne.s32.totalorder %s31, %s34
      %p43 = scmp.eq.s32.totalorder %s26, 1
      %p44 = por %p42, %p43
      %p45 = scmp.ne.s32.totalorder %s34, %s35
      %p46 = scmp.eq.s32.totalorder %s26, 0
      %p47 = por %p45, %p46
      %p48 = scmp.ne.s32.totalorder %s34, %s35
      %p49 = scmp.eq.s32.totalorder %s27, 1
      %p50 = por %p48, %p49
      %p52 = scmp.ne.s32.totalorder %s35, %s51
      %p53 = scmp.eq.s32.totalorder %s27, 0
      %p54 = por %p52, %p53
      %s56 = sadd.s32 %s55, 1
      %p59 = scmp.eq.s32.totalorder %s21, 1
      %p60 = scmp.ne.s32.totalorder %s55, %s57
      %p61 = scmp.eq.s32.totalorder %s21, 0
      %p62 = por %p60, %p61
      %p63 = scmp.ne.s32.totalorder %s55, %s57
      %p64 = scmp.eq.s32.totalorder %s26, 1
      %p65 = por %p63, %p64
      %p66 = scmp.ne.s32.totalorder %s57, %s58
      %p67 = scmp.eq.s32.totalorder %s26, 0
      %p68 = por %p66, %p67
      %p69 = scmp.ne.s32.totalorder %s57, %s58
      %p70 = scmp.eq.s32.totalorder %s27, 1
      %p71 = por %p69, %p70
      %p73 = scmp.ne.s32.totalorder %s58, %s72
      %p74 = scmp.eq.s32.totalorder %s27, 0
      %p75 = por %p73, %p74
      %s77 = sadd.s32 %s76, 1
      %p80 = scmp.eq.s32.totalorder %s21, 1
      %p81 = scmp.ne.s32.totalorder %s76, %s78
      %p82 = scmp.eq.s32.totalorder %s21, 0
      %p83 = por %p81, %p82
      %p84 = scmp.ne.s32.totalorder %s76, %s78
      %p85 = scmp.eq.s32.totalorder %s26, 1
      %p86 = por %p84, %p85
      %p87 = scmp.ne.s32.totalorder %s78, %s79
      %p88 = scmp.eq.s32.totalorder %s26, 0
      %p89 = por %p87, %p88
      %p90 = scmp.ne.s32.totalorder %s78, %s79
      %p91 = scmp.eq.s32.totalorder %s27, 1
      %p92 = por %p90, %p91
      %p94 = scmp.ne.s32.totalorder %s79, %s93
      %p95 = scmp.eq.s32.totalorder %s27, 0
      %p96 = por %p94, %p95
      %s98 = sadd.s32 %s97, 1
      %p101 = scmp.eq.s32.totalorder %s21, 1
      %p102 = scmp.ne.s32.totalorder %s97, %s99
      %p103 = scmp.eq.s32.totalorder %s21, 0
      %p104 = por %p102, %p103
      %p105 = scmp.ne.s32.totalorder %s97, %s99
      %p106 = scmp.eq.s32.totalorder %s26, 1
      %p107 = por %p105, %p106
      %p108 = scmp.ne.s32.totalorder %s99, %s100
      %p109 = scmp.eq.s32.totalorder %s26, 0
      %p110 = por %p108, %p109
      %p111 = scmp.ne.s32.totalorder %s99, %s100
      %p112 = scmp.eq.s32.totalorder %s27, 1
      %p113 = por %p111, %p112
      %p115 = scmp.ne.s32.totalorder %s100, %s114
      %p116 = scmp.eq.s32.totalorder %s27, 0
      %p117 = por %p115, %p116
      %s119 = sadd.s32 %s118, 1
      %p122 = scmp.eq.s32.totalorder %s21, 1
      %p123 = scmp.ne.s32.totalorder %s118, %s120
      %p124 = scmp.eq.s32.totalorder %s21, 0
      %p125 = por %p123, %p124
      %p126 = scmp.ne.s32.totalorder %s118, %s120
      %p127 = scmp.eq.s32.totalorder %s26, 1
      %p128 = por %p126, %p127
      %p129 = scmp.ne.s32.totalorder %s120, %s121
      %p130 = scmp.eq.s32.totalorder %s26, 0
      %p131 = por %p129, %p130
      %p132 = scmp.ne.s32.totalorder %s120, %s121
      %p133 = scmp.eq.s32.totalorder %s27, 1
      %p134 = por %p132, %p133
      %p136 = scmp.ne.s32.totalorder %s121, %s135
      %p137 = scmp.eq.s32.totalorder %s27, 0
      %p138 = por %p136, %p137
      %s140 = sadd.s32 %s139, 1
      %p143 = scmp.eq.s32.totalorder %s21, 1
      %p144 = scmp.ne.s32.totalorder %s139, %s141
      %p145 = scmp.eq.s32.totalorder %s21, 0
      %p146 = por %p144, %p145
      %p147 = scmp.ne.s32.totalorder %s139, %s141
      %p148 = scmp.eq.s32.totalorder %s26, 1
      %p149 = por %p147, %p148
      %p150 = scmp.ne.s32.totalorder %s141, %s142
      %p151 = scmp.eq.s32.totalorder %s26, 0
      %p152 = por %p150, %p151
      %p153 = scmp.ne.s32.totalorder %s141, %s142
      %p154 = scmp.eq.s32.totalorder %s27, 1
      %p155 = por %p153, %p154
      %p157 = scmp.ne.s32.totalorder %s142, %s156
      %p158 = scmp.eq.s32.totalorder %s27, 0
      %p159 = por %p157, %p158
      %s161 = sadd.s32 %s160, 1
      %p164 = scmp.eq.s32.totalorder %s21, 1
      %p165 = scmp.ne.s32.totalorder %s160, %s162
      %p166 = scmp.eq.s32.totalorder %s21, 0
      %p167 = por %p165, %p166
      %p168 = scmp.ne.s32.totalorder %s160, %s162
      %p169 = scmp.eq.s32.totalorder %s26, 1
      %p170 = por %p168, %p169
      %p171 = scmp.ne.s32.totalorder %s162, %s163
      %p172 = scmp.eq.s32.totalorder %s26, 0
      %p173 = por %p171, %p172
      %p174 = scmp.ne.s32.totalorder %s162, %s163
      %p175 = scmp.eq.s32.totalorder %s27, 1
      %p176 = por %p174, %p175
      %p178 = scmp.ne.s32.totalorder %s163, %s177
      %p179 = scmp.eq.s32.totalorder %s27, 0
      %p180 = por %p178, %p179
      %s182 = sadd.s32 %s181, 1
      %p185 = scmp.eq.s32.totalorder %s21, 1
      %p186 = scmp.ne.s32.totalorder %s181, %s183
      %p187 = scmp.eq.s32.totalorder %s21, 0
      %p188 = por %p186, %p187
      %p189 = scmp.ne.s32.totalorder %s181, %s183
      %p190 = scmp.eq.s32.totalorder %s26, 1
      %p191 = por %p189, %p190
      %p192 = scmp.ne.s32.totalorder %s183, %s184
      %p193 = scmp.eq.s32.totalorder %s26, 0
      %p194 = por %p192, %p193
      %p195 = scmp.ne.s32.totalorder %s183, %s184
      %p196 = scmp.eq.s32.totalorder %s27, 1
      %p197 = por %p195, %p196
      %p199 = scmp.ne.s32.totalorder %s184, %s198
      %p200 = scmp.eq.s32.totalorder %s27, 0
      %p201 = por %p199, %p200
      %s203 = sadd.s32 %s202, 1
      %p206 = scmp.eq.s32.totalorder %s21, 1
      %p207 = scmp.ne.s32.totalorder %s202, %s204
      %p208 = scmp.eq.s32.totalorder %s21, 0
      %p209 = por %p207, %p208
      %p210 = scmp.ne.s32.totalorder %s202, %s204
      %p211 = scmp.eq.s32.totalorder %s26, 1
      %p212 = por %p210, %p211
      %p213 = scmp.ne.s32.totalorder %s204, %s205
      %p214 = scmp.eq.s32.totalorder %s26, 0
      %p215 = por %p213, %p214
      %p216 = scmp.ne.s32.totalorder %s204, %s205
      %p217 = scmp.eq.s32.totalorder %s27, 1
      %p218 = por %p216, %p217
      %p220 = scmp.ne.s32.totalorder %s205, %s219
      %p221 = scmp.eq.s32.totalorder %s27, 0
      %p222 = por %p220, %p221
      %s224 = sadd.s32 %s223, 1
      %p227 = scmp.eq.s32.totalorder %s21, 1
      %p228 = scmp.ne.s32.totalorder %s223, %s225
      %p229 = scmp.eq.s32.totalorder %s21, 0
      %p230 = por %p228, %p229
      %p231 = scmp.ne.s32.totalorder %s223, %s225
      %p232 = scmp.eq.s32.totalorder %s26, 1
      %p233 = por %p231, %p232
      %p234 = scmp.ne.s32.totalorder %s225, %s226
      %p235 = scmp.eq.s32.totalorder %s26, 0
      %p236 = por %p234, %p235
      %p237 = scmp.ne.s32.totalorder %s225, %s226
      %p238 = scmp.eq.s32.totalorder %s27, 1
      %p239 = por %p237, %p238
      %p241 = scmp.ne.s32.totalorder %s226, %s240
      %p242 = scmp.eq.s32.totalorder %s27, 0
      %p243 = por %p241, %p242
      %s245 = sadd.s32 %s244, 1
      %p248 = scmp.eq.s32.totalorder %s21, 1
      %p249 = scmp.ne.s32.totalorder %s244, %s246
      %p250 = scmp.eq.s32.totalorder %s21, 0
      %p251 = por %p249, %p250
      %p252 = scmp.ne.s32.totalorder %s244, %s246
      %p253 = scmp.eq.s32.totalorder %s26, 1
      %p254 = por %p252, %p253
      %p255 = scmp.ne.s32.totalorder %s246, %s247
      %p256 = scmp.eq.s32.totalorder %s26, 0
      %p257 = por %p255, %p256
      %p258 = scmp.ne.s32.totalorder %s246, %s247
      %p259 = scmp.eq.s32.totalorder %s27, 1
      %p260 = por %p258, %p259
      %p262 = scmp.ne.s32.totalorder %s247, %s261
      %p263 = scmp.eq.s32.totalorder %s27, 0
      %p264 = por %p262, %p263
      %s265 = ssub.s32 %s21, %s28
      %p266 = scmp.eq.s32.totalorder %s265, 0
      %s268 = sadd.s32 %s267, 1
      %s269 = scalar_select %p266, %s267, %s268
      %p272 = pneg %p266
      %p273 = scmp.eq.s32.totalorder %s21, 1
      %p274 = por %p272, %p273
      %p275 = scmp.ne.s32.totalorder %s267, %s270
      %p276 = scmp.eq.s32.totalorder %s21, 0
      %p277 = por %p275, %p276
      %p278 = scmp.ne.s32.totalorder %s267, %s270
      %p279 = scmp.eq.s32.totalorder %s26, 1
      %p280 = por %p278, %p279
      %p281 = scmp.ne.s32.totalorder %s270, %s271
      %p282 = scmp.eq.s32.totalorder %s26, 0
      %p283 = por %p281, %p282
      %p284 = scmp.ne.s32.totalorder %s270, %s271
      %p285 = scmp.eq.s32.totalorder %s27, 1
      %p286 = por %p284, %p285
      %p288 = scmp.ne.s32.totalorder %s271, %s287
      %p289 = scmp.eq.s32.totalorder %s27, 0
      %p290 = por %p288, %p289
      %p291 = scmp.le.s32.totalorder 1, %s21
      %p292 = scmp.lt.s32.totalorder %s21, 3
      %p293 = pnand %p291, %p292
      %p294 = pneg %p293
      // Predicated region
      $region9: #{tpu_custom_call.1} parent=5 // pred_check
        _
      $region10: #{tpu_custom_call.1} parent=5 // pred_check_branch
        %296 = sbr.rel (%p293) target = $region12
      $region11: #{tpu_custom_call.1} parent=5 // pred_region
        %s297 = ssub.s32 %s21, 1
        // Predicated region
        $region13: #{tpu_custom_call.1} parent=11 // pred_check
          %p298 = pneg %p68
        $region14: #{tpu_custom_call.1} parent=11 // pred_check_branch
          %300 = sbr.rel (%p298) target = $region16
        $region15: #{tpu_custom_call.1} parent=11 // pred_region
          _
        $region16: #{tpu_custom_call.1} parent=11 // pred_fallthru
          _
        // Predicated region
        $region17: #{tpu_custom_call.1} parent=11 // pred_check
          %p301 = pneg %p89
        $region18: #{tpu_custom_call.1} parent=11 // pred_check_branch
          %303 = sbr.rel (%p301) target = $region20
        $region19: #{tpu_custom_call.1} parent=11 // pred_region
          _
        $region20: #{tpu_custom_call.1} parent=11 // pred_fallthru
          _
        // Predicated region
        $region21: #{tpu_custom_call.1} parent=11 // pred_check
          %p304 = pneg %p110
        $region22: #{tpu_custom_call.1} parent=11 // pred_check_branch
          %306 = sbr.rel (%p304) target = $region24
        $region23: #{tpu_custom_call.1} parent=11 // pred_region
          _
        $region24: #{tpu_custom_call.1} parent=11 // pred_fallthru
          _
        // Predicated region
        $region25: #{tpu_custom_call.1} parent=11 // pred_check
          %p307 = pneg %p131
        $region26: #{tpu_custom_call.1} parent=11 // pred_check_branch
          %309 = sbr.rel (%p307) target = $region28
        $region27: #{tpu_custom_call.1} parent=11 // pred_region
          _
        $region28: #{tpu_custom_call.1} parent=11 // pred_fallthru
          _
        // Predicated region
        $region29: #{tpu_custom_call.1} parent=11 // pred_check
          %p310 = pneg %p152
        $region30: #{tpu_custom_call.1} parent=11 // pred_check_branch
          %312 = sbr.rel (%p310) target = $region32
        $region31: #{tpu_custom_call.1} parent=11 // pred_region
          _
        $region32: #{tpu_custom_call.1} parent=11 // pred_fallthru
          _
        // Predicated region
        $region33: #{tpu_custom_call.1} parent=11 // pred_check
          %p313 = pneg %p173
        $region34: #{tpu_custom_call.1} parent=11 // pred_check_branch
          %315 = sbr.rel (%p313) target = $region36
        $region35: #{tpu_custom_call.1} parent=11 // pred_region
          _
        $region36: #{tpu_custom_call.1} parent=11 // pred_fallthru
          _
        // Predicated region
        $region37: #{tpu_custom_call.1} parent=11 // pred_check
          %p316 = pneg %p194
        $region38: #{tpu_custom_call.1} parent=11 // pred_check_branch
          %318 = sbr.rel (%p316) target = $region40
        $region39: #{tpu_custom_call.1} parent=11 // pred_region
          %s320 = ssub.s32 2048, 2048
          %321 = vsyncadd [#allocation3], %s320
          %s322 = sshll.u32 [#allocation2], 4
          %s323 = int_to_ptr.vmem [resolvable:$true] %s322
          %328 = dma.hbm_to_vmem [thread:$0]  %s7, 2048, %s323, [#allocation3], 64, 64, 4
        $region40: #{tpu_custom_call.1} parent=11 // pred_fallthru
          _
        // Predicated region
        $region41: #{tpu_custom_call.1} parent=11 // pred_check
          %p329 = pneg %p215
        $region42: #{tpu_custom_call.1} parent=11 // pred_check_branch
          %331 = sbr.rel (%p329) target = $region44
        $region43: #{tpu_custom_call.1} parent=11 // pred_region
          _
        $region44: #{tpu_custom_call.1} parent=11 // pred_fallthru
          _
        // Predicated region
        $region45: #{tpu_custom_call.1} parent=11 // pred_check
          %p332 = pneg %p236
        $region46: #{tpu_custom_call.1} parent=11 // pred_check_branch
          %334 = sbr.rel (%p332) target = $region48
        $region47: #{tpu_custom_call.1} parent=11 // pred_region
          _
        $region48: #{tpu_custom_call.1} parent=11 // pred_fallthru
          _
        // Predicated region
        $region49: #{tpu_custom_call.1} parent=11 // pred_check
          %p335 = pneg %p257
        $region50: #{tpu_custom_call.1} parent=11 // pred_check_branch
          %337 = sbr.rel (%p335) target = $region52
        $region51: #{tpu_custom_call.1} parent=11 // pred_region
          _
        $region52: #{tpu_custom_call.1} parent=11 // pred_fallthru
          _
      $region12: #{tpu_custom_call.1} parent=5 // pred_fallthru
        _
      %p338 = scmp.lt.s32.totalorder %s21, 2
      // Predicated region
      $region53: #{tpu_custom_call.1} parent=5 // pred_check
        %p339 = pneg %p338
      $region54: #{tpu_custom_call.1} parent=5 // pred_check_branch
        %341 = sbr.rel (%p339) target = $region56
      $region55: #{tpu_custom_call.1} parent=5 // pred_region
        // Predicated region
        $region57: #{tpu_custom_call.1} parent=55 // pred_check
          %p342 = pneg %p41
        $region58: #{tpu_custom_call.1} parent=55 // pred_check_branch
          %344 = sbr.rel (%p342) target = $region60
        $region59: #{tpu_custom_call.1} parent=55 // pred_region
          %s345 = smul.u32 4, %s21
          %p346 = scmp.lt.s32.totalorder %s345, 7
          %s347 = scalar_select %p346, %s345, 7
          %s348 = smul.addr %s347, 8
          %s349 = scalar_lea.vmem %s0, %s348
          %s350 = smul.u32 4, %s21
        $region60: #{tpu_custom_call.1} parent=55 // pred_fallthru
          _
      $region56: #{tpu_custom_call.1} parent=5 // pred_fallthru
        _
      %p351 = scmp.le.s32.totalorder 1, %s21
      %p352 = scmp.lt.s32.totalorder %s21, 3
      %p353 = pnand %p351, %p352
      %p354 = pneg %p353
      // Predicated region
      $region61: #{tpu_custom_call.1} parent=5 // pred_check
        _
      $region62: #{tpu_custom_call.1} parent=5 // pred_check_branch
        %356 = sbr.rel (%p353) target = $region64
      $region63: #{tpu_custom_call.1} parent=5 // pred_region
        %s357 = ssub.s32 %s21, 1
        // Predicated region
        $region65: #{tpu_custom_call.1} parent=63 // pred_check
          %p358 = pneg %p194
        $region66: #{tpu_custom_call.1} parent=63 // pred_check_branch
          %360 = sbr.rel (%p358) target = $region68
        $region67: #{tpu_custom_call.1} parent=63 // pred_region
          %361 = dma.done [#allocation3], 2048
        $region68: #{tpu_custom_call.1} parent=63 // pred_fallthru
          _
        %s362 = smul.u32 4, %s26
        %p363 = scmp.lt.s32.totalorder %s362, 7
        %s364 = scalar_select %p363, %s362, 7
        %s365 = smul.addr %s364, 8
        %s366 = scalar_lea.vmem %s0, %s365
        %p367 = pneg %p47
        %p368 = pneg %p44
        %p369 = pneg %p68
        %p370 = pneg %p65
        %p371 = pneg %p89
        %p372 = pneg %p86
        %p373 = pneg %p110
        %p374 = pneg %p107
        %p375 = pneg %p131
        %p376 = pneg %p128
        %p377 = pneg %p152
        %p378 = pneg %p149
        %p379 = pneg %p173
        %p380 = pneg %p170
        %p381 = pneg %p194
        %p382 = pneg %p191
        %p383 = pneg %p215
        %p384 = pneg %p212
        %p385 = pneg %p236
        %p386 = pneg %p233
        %p387 = pneg %p257
        %p388 = pneg %p254
        %p389 = pneg %p283
        %p390 = pneg %p280
        %s391 = sand.u32 %s270, 1
        %s392 = scalar_lea.sflag [#allocation4], %s391
        %s393 = sand.u32 %s270, 1
        %s394 = smul.addr %s393, 16
        %s395 = scalar_lea.vmem [#allocation5], %s394
        %s396 = smul.u32 4, %s26
        %p397 = scmp.lt.s32.totalorder %s396, 7
        %s398 = scalar_select %p397, %s396, 7
        %s399 = smul.addr %s398, 8
        %s400 = scalar_lea.vmem %s0, %s399
        %s401 = smul.u32 4, %s26
        %s402 = smul.u32 4, %s26
        %v404 = vld [vmem:[%s400] sm:$0xff]
        %v405 = vld [vmem:[%s400 + $0x8] sm:$0xff]
        %v406 = vld [vmem:[%s400 + $0x10] sm:$0xff]
        %v407 = vld [vmem:[%s400 + $0x18] sm:$0xff]
        %v408 = vld [vmem:[%s1] sm:$0x1]
        %v409 = vld [vmem:[%s2] sm:$0x1]
        %vm410 = vcmask 261120
        %v411 = vsel %vm410, %v404, 0.0
        %412 = vadd.xlane.f32.xlu0 %v411
        %v413 = vpop.xlane.xlu0 %412
        %v414 = vsel %vm410, %v405, 0.0
        %415 = vadd.xlane.f32.xlu0 %v414
        %v416 = vpop.xlane.xlu0 %415
        %v417 = vsel %vm410, %v406, 0.0
        %418 = vadd.xlane.f32.xlu0 %v417
        %v419 = vpop.xlane.xlu0 %418
        %v420 = vsel %vm410, %v407, 0.0
        %421 = vadd.xlane.f32.xlu0 %v420
        %v422 = vpop.xlane.xlu0 %421
        %v423 = vmul.f32 %v413, 0.03125
        %v424 = vmul.f32 %v416, 0.03125
        %v425 = vmul.f32 %v419, 0.03125
        %v426 = vmul.f32 %v422, 0.03125
        %v427 = vsub.f32 %v404, %v423
        %v428 = vsub.f32 %v405, %v424
        %v429 = vsub.f32 %v406, %v425
        %v430 = vsub.f32 %v407, %v426
        %v431 = vmul.f32 %v427, %v427
        %v432 = vmul.f32 %v428, %v428
        %v433 = vmul.f32 %v429, %v429
        %v434 = vmul.f32 %v430, %v430
        %v435 = vsel %vm410, %v431, 0.0
        %436 = vadd.xlane.f32.xlu0 %v435
        %v437 = vpop.xlane.xlu0 %436
        %v438 = vsel %vm410, %v432, 0.0
        %439 = vadd.xlane.f32.xlu0 %v438
        %v440 = vpop.xlane.xlu0 %439
        %v441 = vsel %vm410, %v433, 0.0
        %442 = vadd.xlane.f32.xlu0 %v441
        %v443 = vpop.xlane.xlu0 %442
        %v444 = vsel %vm410, %v434, 0.0
        %445 = vadd.xlane.f32.xlu0 %v444
        %v446 = vpop.xlane.xlu0 %445
        %v447 = vmul.f32 %v437, 0.03125
        %v448 = vmul.f32 %v440, 0.03125
        %v449 = vmul.f32 %v443, 0.03125
        %v450 = vmul.f32 %v446, 0.03125
        %v451 = vadd.f32 %v447, 1e-05
        %v452 = vadd.f32 %v448, 1e-05
        %v453 = vadd.f32 %v449, 1e-05
        %v454 = vadd.f32 %v450, 1e-05
        %v455 = vrsqrt.pop %v451
        %v456 = vrsqrt.pop %v452
        %v457 = vrsqrt.pop %v453
        %v458 = vrsqrt.pop %v454
        %v459 = vmul.f32 %v427, %v455
        %v460 = vmul.f32 %v428, %v456
        %v461 = vmul.f32 %v429, %v457
        %v462 = vmul.f32 %v430, %v458
        %v464 = vlaneseq
        %v465 = vshrl.u32 %v464, 7
        %v466 = vsub.s32 0, %v465
        %v467 = vrot.slane %v408, %v466
        %v469 = vmul.f32 %v459, %v467
        %v470 = vmul.f32 %v460, %v467
        %v471 = vmul.f32 %v461, %v467
        %v472 = vmul.f32 %v462, %v467
        %v474 = vlaneseq
        %v475 = vshrl.u32 %v474, 7
        %v476 = vsub.s32 0, %v475
        %v477 = vrot.slane %v409, %v476
        %v479 = vadd.f32 %v469, %v477
        %v480 = vadd.f32 %v470, %v477
        %v481 = vadd.f32 %v471, %v477
        %v482 = vadd.f32 %v472, %v477
        %v483 = vpack.c.bf16 %v480, %v479
        %v484 = vpack.c.bf16 %v482, %v481
        %v485 = vld [vmem:[%s3] sm:$0xf]
        %v486 = vld [vmem:[%s3 + $0x4] sm:$0xf]
        %v487 = vld [vmem:[%s3 + $0x8] sm:$0xf]
        %v488 = vld [vmem:[%s3 + $0xc] sm:$0xf]
        %v489 = vld [vmem:[%s4] sm:$0x1]
        %v491 = vlaneseq
        %v492 = vshrl.u32 %v491, 7
        %v493 = vsub.s32 0, %v492
        %v494 = vrot.slane %v489, %v493
        %v500 = vunpack.c.l.b16 %v485
        %v501 = vunpack.c.l.b16 %v486
        %v502 = vunpack.c.l.b16 %v487
        %v503 = vunpack.c.l.b16 %v488
        %v504 = vpack.c.b16 %v501, %v500
        %v505 = vpack.c.b16 %v503, %v502
        %v509 = vsel %vm410, %v483, 0
        %v512 = vsel %vm410, %v484, 0
        %514 = vmatprep.subr.bf16.mxu0 0
        %515 = vmatpush1.bf16.msra.mxu0 %v504
        %516 = vmatprep.subr.bf16.mxu0 0
        %517 = vmatpush1.bf16.msra.mxu0 %v505
        %518 = vmatprep.subr.bf16.mxu0 0
        %519 = vmatpush1.bf16.msra.mxu0 0
        %520 = vmatprep.subr.bf16.mxu0 0
        %521 = vmatpush1.bf16.msra.mxu0 0
        %522 = vmatprep.subr.bf16.mxu0 0
        %523 = vmatpush1.bf16.msra.mxu0 0
        %524 = vmatprep.subr.bf16.mxu0 0
        %525 = vmatpush1.bf16.msra.mxu0 0
        %526 = vmatprep.subr.bf16.mxu0 0
        %527 = vmatpush1.bf16.msra.mxu0 0
        %528 = vmatprep.subr.bf16.mxu0 0
        %529 = vmatpush1.bf16.msra.mxu0 0
        %530 = vmatprep.subr.bf16.mxu0 0
        %531 = vmatpush1.bf16.msra.mxu0 0
        %532 = vmatprep.subr.bf16.mxu0 0
        %533 = vmatpush1.bf16.msra.mxu0 0
        %534 = vmatprep.subr.bf16.mxu0 0
        %535 = vmatpush1.bf16.msra.mxu0 0
        %536 = vmatprep.subr.bf16.mxu0 0
        %537 = vmatpush1.bf16.msra.mxu0 0
        %538 = vmatprep.subr.bf16.mxu0 0
        %539 = vmatpush1.bf16.msra.mxu0 0
        %540 = vmatprep.subr.bf16.mxu0 0
        %541 = vmatpush1.bf16.msra.mxu0 0
        %542 = vmatprep.subr.bf16.mxu0 0
        %543 = vmatpush1.bf16.msra.mxu0 0
        %544 = vmatprep.subr.bf16.mxu0 0
        %545 = vmatpush1.bf16.msra.mxu0 0
        %546 = vmatprep.mubr.bf16.mxu0 0
        %547 = vmatmul.mubr.bf16.gmra.mrb[0].mxu0 %v509
        %v548 = vpop.f32.mrb[0].mxu0
        %v549 = vadd.f32 %v494, %v548
        %v550 = vpop.f32.mrb[0].mxu0
        %v551 = vpop.f32.mrb[0].mxu0
        %v552 = vadd.f32 %v494, %v551
        %v553 = vpop.f32.mrb[0].mxu0
        %554 = vmatprep.mubr.bf16.mxu0 0
        %555 = vmatmul.mubr.bf16.gmra.mrb[0].mxu0 %v512
        %v556 = vpop.f32.mrb[0].mxu0
        %v557 = vadd.f32 %v494, %v556
        %v558 = vpop.f32.mrb[0].mxu0
        %v559 = vpop.f32.mrb[0].mxu0
        %v560 = vadd.f32 %v494, %v559
        %v561 = vpop.f32.mrb[0].mxu0
        %562 = vdwg.mxu0
        %v563 = vld [vmem:[%s5] sm:$0x1]
        %v564 = vld [vmem:[%s6] sm:$0x1]
        %565 = vadd.xlane.f32.xlu0 %v549
        %v566 = vpop.xlane.xlu0 %565
        %567 = vadd.xlane.f32.xlu0 %v552
        %v568 = vpop.xlane.xlu0 %567
        %569 = vadd.xlane.f32.xlu0 %v557
        %v570 = vpop.xlane.xlu0 %569
        %571 = vadd.xlane.f32.xlu0 %v560
        %v572 = vpop.xlane.xlu0 %571
        %v573 = vmul.f32 %v566, 0.015625
        %v574 = vmul.f32 %v568, 0.015625
        %v575 = vmul.f32 %v570, 0.015625
        %v576 = vmul.f32 %v572, 0.015625
        %v577 = vsub.f32 %v549, %v573
        %v578 = vsub.f32 %v552, %v574
        %v579 = vsub.f32 %v557, %v575
        %v580 = vsub.f32 %v560, %v576
        %v581 = vlaneseq
        %v582 = vand.u32 %v581, 127
        %vm583 = vcmp.lt.s32.totalorder %v582, 64
        %v584 = vsel %vm583, %v577, 0.0
        %v585 = vsel %vm583, %v578, 0.0
        %v586 = vsel %vm583, %v579, 0.0
        %v587 = vsel %vm583, %v580, 0.0
        %v588 = vmul.f32 %v584, %v584
        %v589 = vmul.f32 %v585, %v585
        %v590 = vmul.f32 %v586, %v586
        %v591 = vmul.f32 %v587, %v587
        %592 = vadd.xlane.f32.xlu0 %v588
        %v593 = vpop.xlane.xlu0 %592
        %594 = vadd.xlane.f32.xlu0 %v589
        %v595 = vpop.xlane.xlu0 %594
        %596 = vadd.xlane.f32.xlu0 %v590
        %v597 = vpop.xlane.xlu0 %596
        %598 = vadd.xlane.f32.xlu0 %v591
        %v599 = vpop.xlane.xlu0 %598
        %v600 = vmul.f32 %v593, 0.015625
        %v601 = vmul.f32 %v595, 0.015625
        %v602 = vmul.f32 %v597, 0.015625
        %v603 = vmul.f32 %v599, 0.015625
        %v604 = vadd.f32 %v600, 1e-05
        %v605 = vadd.f32 %v601, 1e-05
        %v606 = vadd.f32 %v602, 1e-05
        %v607 = vadd.f32 %v603, 1e-05
        %v608 = vrsqrt.pop %v604
        %v609 = vrsqrt.pop %v605
        %v610 = vrsqrt.pop %v606
        %v611 = vrsqrt.pop %v607
        %v612 = vmul.f32 %v584, %v608
        %v613 = vmul.f32 %v585, %v609
        %v614 = vmul.f32 %v586, %v610
        %v615 = vmul.f32 %v587, %v611
        %v617 = vlaneseq
        %v618 = vshrl.u32 %v617, 7
        %v619 = vsub.s32 0, %v618
        %v620 = vrot.slane %v563, %v619
        %v622 = vmul.f32 %v612, %v620
        %v623 = vmul.f32 %v613, %v620
        %v624 = vmul.f32 %v614, %v620
        %v625 = vmul.f32 %v615, %v620
        %v627 = vlaneseq
        %v628 = vshrl.u32 %v627, 7
        %v629 = vsub.s32 0, %v628
        %v630 = vrot.slane %v564, %v629
        %v632 = vadd.f32 %v622, %v630
        %v633 = vadd.f32 %v623, %v630
        %v634 = vadd.f32 %v624, %v630
        %v635 = vadd.f32 %v625, %v630
        %v636 = vmax.f32 %v632, 0.0
        %v637 = vmax.f32 %v633, 0.0
        %v638 = vmax.f32 %v634, 0.0
        %v639 = vmax.f32 %v635, 0.0
        %v640 = vpack.c.bf16 %v637, %v636
        %v641 = vpack.c.bf16 %v639, %v638
        %v642 = vld [vmem:[#allocation2] sm:$0xf]
        %v643 = vld [vmem:[#allocation2 + $0x4] sm:$0xf]
        %v644 = vld [vmem:[#allocation2 + $0x8] sm:$0xf]
        %v645 = vld [vmem:[#allocation2 + $0xc] sm:$0xf]
        %v646 = vld [vmem:[#allocation2 + $0x10] sm:$0xf]
        %v647 = vld [vmem:[#allocation2 + $0x14] sm:$0xf]
        %v648 = vld [vmem:[#allocation2 + $0x18] sm:$0xf]
        %v649 = vld [vmem:[#allocation2 + $0x1c] sm:$0xf]
        %v650 = vld [vmem:[#allocation2 + $0x20] sm:$0xf]
        %v651 = vld [vmem:[#allocation2 + $0x24] sm:$0xf]
        %v652 = vld [vmem:[#allocation2 + $0x28] sm:$0xf]
        %v653 = vld [vmem:[#allocation2 + $0x2c] sm:$0xf]
        %v654 = vld [vmem:[#allocation2 + $0x30] sm:$0xf]
        %v655 = vld [vmem:[#allocation2 + $0x34] sm:$0xf]
        %v656 = vld [vmem:[#allocation2 + $0x38] sm:$0xf]
        %v657 = vld [vmem:[#allocation2 + $0x3c] sm:$0xf]
        %v658 = vld [vmem:[%s8] sm:$0x1]
        %v660 = vlaneseq
        %v661 = vshrl.u32 %v660, 7
        %v662 = vsub.s32 0, %v661
        %v663 = vrot.slane %v658, %v662
        %v681 = vunpack.c.l.b16 %v642
        %v682 = vunpack.c.l.b16 %v643
        %v683 = vunpack.c.l.b16 %v644
        %v684 = vunpack.c.l.b16 %v645
        %v685 = vunpack.c.l.b16 %v646
        %v686 = vunpack.c.l.b16 %v647
        %v687 = vunpack.c.l.b16 %v648
        %v688 = vunpack.c.l.b16 %v649
        %v689 = vunpack.c.l.b16 %v650
        %v690 = vunpack.c.l.b16 %v651
        %v691 = vunpack.c.l.b16 %v652
        %v692 = vunpack.c.l.b16 %v653
        %v693 = vunpack.c.l.b16 %v654
        %v694 = vunpack.c.l.b16 %v655
        %v695 = vunpack.c.l.b16 %v656
        %v696 = vunpack.c.l.b16 %v657
        %v697 = vpack.c.b16 %v682, %v681
        %v698 = vpack.c.b16 %v684, %v683
        %v699 = vpack.c.b16 %v686, %v685
        %v700 = vpack.c.b16 %v688, %v687
        %v701 = vpack.c.b16 %v690, %v689
        %v702 = vpack.c.b16 %v692, %v691
        %v703 = vpack.c.b16 %v694, %v693
        %v704 = vpack.c.b16 %v696, %v695
        %713 = vmatprep.subr.bf16.mxu0 0
        %714 = vmatpush1.bf16.msra.mxu0 %v697
        %715 = vmatprep.subr.bf16.mxu0 0
        %716 = vmatpush1.bf16.msra.mxu0 %v698
        %717 = vmatprep.subr.bf16.mxu0 0
        %718 = vmatpush1.bf16.msra.mxu0 %v699
        %719 = vmatprep.subr.bf16.mxu0 0
        %720 = vmatpush1.bf16.msra.mxu0 %v700
        %721 = vmatprep.subr.bf16.mxu0 0
        %722 = vmatpush1.bf16.msra.mxu0 %v701
        %723 = vmatprep.subr.bf16.mxu0 0
        %724 = vmatpush1.bf16.msra.mxu0 %v702
        %725 = vmatprep.subr.bf16.mxu0 0
        %726 = vmatpush1.bf16.msra.mxu0 %v703
        %727 = vmatprep.subr.bf16.mxu0 0
        %728 = vmatpush1.bf16.msra.mxu0 %v704
        %729 = vmatprep.subr.bf16.mxu0 0
        %730 = vmatpush1.bf16.msra.mxu0 0
        %731 = vmatprep.subr.bf16.mxu0 0
        %732 = vmatpush1.bf16.msra.mxu0 0
        %733 = vmatprep.subr.bf16.mxu0 0
        %734 = vmatpush1.bf16.msra.mxu0 0
        %735 = vmatprep.subr.bf16.mxu0 0
        %736 = vmatpush1.bf16.msra.mxu0 0
        %737 = vmatprep.subr.bf16.mxu0 0
        %738 = vmatpush1.bf16.msra.mxu0 0
        %739 = vmatprep.subr.bf16.mxu0 0
        %740 = vmatpush1.bf16.msra.mxu0 0
        %741 = vmatprep.subr.bf16.mxu0 0
        %742 = vmatpush1.bf16.msra.mxu0 0
        %743 = vmatprep.subr.bf16.mxu0 0
        %744 = vmatpush1.bf16.msra.mxu0 0
        %745 = vmatprep.mubr.bf16.mxu0 0
        %746 = vmatmul.mubr.bf16.gmra.mrb[0].mxu0 %v640
        %v747 = vpop.f32.mrb[0].mxu0
        %v748 = vadd.f32 %v663, %v747
        %v749 = vpop.f32.mrb[0].mxu0
        %v750 = vpop.f32.mrb[0].mxu0
        %v751 = vadd.f32 %v663, %v750
        %v752 = vpop.f32.mrb[0].mxu0
        %753 = vmatprep.mubr.bf16.mxu0 0
        %754 = vmatmul.mubr.bf16.gmra.mrb[0].mxu0 %v641
        %v755 = vpop.f32.mrb[0].mxu0
        %v756 = vadd.f32 %v663, %v755
        %v757 = vpop.f32.mrb[0].mxu0
        %v758 = vpop.f32.mrb[0].mxu0
        %v759 = vadd.f32 %v663, %v758
        %v760 = vpop.f32.mrb[0].mxu0
        %761 = vdwg.mxu0
        %v762 = vld [vmem:[%s9] sm:$0x1]
        %v763 = vld [vmem:[%s10] sm:$0x1]
        %764 = vadd.xlane.f32.xlu0 %v748
        %v765 = vpop.xlane.xlu0 %764
        %766 = vadd.xlane.f32.xlu0 %v751
        %v767 = vpop.xlane.xlu0 %766
        %768 = vadd.xlane.f32.xlu0 %v756
        %v769 = vpop.xlane.xlu0 %768
        %770 = vadd.xlane.f32.xlu0 %v759
        %v771 = vpop.xlane.xlu0 %770
        %v772 = vmul.f32 %v765, 0.015625
        %v773 = vmul.f32 %v767, 0.015625
        %v774 = vmul.f32 %v769, 0.015625
        %v775 = vmul.f32 %v771, 0.015625
        %v776 = vsub.f32 %v748, %v772
        %v777 = vsub.f32 %v751, %v773
        %v778 = vsub.f32 %v756, %v774
        %v779 = vsub.f32 %v759, %v775
        %v780 = vsel %vm583, %v776, 0.0
        %v781 = vsel %vm583, %v777, 0.0
        %v782 = vsel %vm583, %v778, 0.0
        %v783 = vsel %vm583, %v779, 0.0
        %v784 = vmul.f32 %v780, %v780
        %v785 = vmul.f32 %v781, %v781
        %v786 = vmul.f32 %v782, %v782
        %v787 = vmul.f32 %v783, %v783
        %788 = vadd.xlane.f32.xlu0 %v784
        %v789 = vpop.xlane.xlu0 %788
        %790 = vadd.xlane.f32.xlu0 %v785
        %v791 = vpop.xlane.xlu0 %790
        %792 = vadd.xlane.f32.xlu0 %v786
        %v793 = vpop.xlane.xlu0 %792
        %794 = vadd.xlane.f32.xlu0 %v787
        %v795 = vpop.xlane.xlu0 %794
        %v796 = vmul.f32 %v789, 0.015625
        %v797 = vmul.f32 %v791, 0.015625
        %v798 = vmul.f32 %v793, 0.015625
        %v799 = vmul.f32 %v795, 0.015625
        %v800 = vadd.f32 %v796, 1e-05
        %v801 = vadd.f32 %v797, 1e-05
        %v802 = vadd.f32 %v798, 1e-05
        %v803 = vadd.f32 %v799, 1e-05
        %v804 = vrsqrt.pop %v800
        %v805 = vrsqrt.pop %v801
        %v806 = vrsqrt.pop %v802
        %v807 = vrsqrt.pop %v803
        %v808 = vmul.f32 %v780, %v804
        %v809 = vmul.f32 %v781, %v805
        %v810 = vmul.f32 %v782, %v806
        %v811 = vmul.f32 %v783, %v807
        %v813 = vlaneseq
        %v814 = vshrl.u32 %v813, 7
        %v815 = vsub.s32 0, %v814
        %v816 = vrot.slane %v762, %v815
        %v818 = vmul.f32 %v808, %v816
        %v819 = vmul.f32 %v809, %v816
        %v820 = vmul.f32 %v810, %v816
        %v821 = vmul.f32 %v811, %v816
        %v823 = vlaneseq
        %v824 = vshrl.u32 %v823, 7
        %v825 = vsub.s32 0, %v824
        %v826 = vrot.slane %v763, %v825
        %v828 = vadd.f32 %v818, %v826
        %v829 = vadd.f32 %v819, %v826
        %v830 = vadd.f32 %v820, %v826
        %v831 = vadd.f32 %v821, %v826
        %v832 = vmax.f32 %v828, 0.0
        %v833 = vmax.f32 %v829, 0.0
        %v834 = vmax.f32 %v830, 0.0
        %v835 = vmax.f32 %v831, 0.0
        %v836 = vpack.c.bf16 %v833, %v832
        %v837 = vpack.c.bf16 %v835, %v834
        %s838 = scalar_lea.vmem [#allocation2], 64
        %v839 = vld [vmem:[%s838] sm:$0xf]
        %v840 = vld [vmem:[%s838 + $0x4] sm:$0xf]
        %v841 = vld [vmem:[%s838 + $0x8] sm:$0xf]
        %v842 = vld [vmem:[%s838 + $0xc] sm:$0xf]
        %v843 = vld [vmem:[%s838 + $0x10] sm:$0xf]
        %v844 = vld [vmem:[%s838 + $0x14] sm:$0xf]
        %v845 = vld [vmem:[%s838 + $0x18] sm:$0xf]
        %v846 = vld [vmem:[%s838 + $0x1c] sm:$0xf]
        %v847 = vld [vmem:[%s838 + $0x20] sm:$0xf]
        %v848 = vld [vmem:[%s838 + $0x24] sm:$0xf]
        %v849 = vld [vmem:[%s838 + $0x28] sm:$0xf]
        %v850 = vld [vmem:[%s838 + $0x2c] sm:$0xf]
        %v851 = vld [vmem:[%s838 + $0x30] sm:$0xf]
        %v852 = vld [vmem:[%s838 + $0x34] sm:$0xf]
        %v853 = vld [vmem:[%s838 + $0x38] sm:$0xf]
        %v854 = vld [vmem:[%s838 + $0x3c] sm:$0xf]
        %s855 = scalar_lea.vmem %s8, 1
        %v856 = vld [vmem:[%s855] sm:$0x1]
        %v858 = vlaneseq
        %v859 = vshrl.u32 %v858, 7
        %v860 = vsub.s32 0, %v859
        %v861 = vrot.slane %v856, %v860
        %v879 = vunpack.c.l.b16 %v839
        %v880 = vunpack.c.l.b16 %v840
        %v881 = vunpack.c.l.b16 %v841
        %v882 = vunpack.c.l.b16 %v842
        %v883 = vunpack.c.l.b16 %v843
        %v884 = vunpack.c.l.b16 %v844
        %v885 = vunpack.c.l.b16 %v845
        %v886 = vunpack.c.l.b16 %v846
        %v887 = vunpack.c.l.b16 %v847
        %v888 = vunpack.c.l.b16 %v848
        %v889 = vunpack.c.l.b16 %v849
        %v890 = vunpack.c.l.b16 %v850
        %v891 = vunpack.c.l.b16 %v851
        %v892 = vunpack.c.l.b16 %v852
        %v893 = vunpack.c.l.b16 %v853
        %v894 = vunpack.c.l.b16 %v854
        %v895 = vpack.c.b16 %v880, %v879
        %v896 = vpack.c.b16 %v882, %v881
        %v897 = vpack.c.b16 %v884, %v883
        %v898 = vpack.c.b16 %v886, %v885
        %v899 = vpack.c.b16 %v888, %v887
        %v900 = vpack.c.b16 %v890, %v889
        %v901 = vpack.c.b16 %v892, %v891
        %v902 = vpack.c.b16 %v894, %v893
        %911 = vmatprep.subr.bf16.mxu0 0
        %912 = vmatpush1.bf16.msra.mxu0 %v895
        %913 = vmatprep.subr.bf16.mxu0 0
        %914 = vmatpush1.bf16.msra.mxu0 %v896
        %915 = vmatprep.subr.bf16.mxu0 0
        %916 = vmatpush1.bf16.msra.mxu0 %v897
        %917 = vmatprep.subr.bf16.mxu0 0
        %918 = vmatpush1.bf16.msra.mxu0 %v898
        %919 = vmatprep.subr.bf16.mxu0 0
        %920 = vmatpush1.bf16.msra.mxu0 %v899
        %921 = vmatprep.subr.bf16.mxu0 0
        %922 = vmatpush1.bf16.msra.mxu0 %v900
        %923 = vmatprep.subr.bf16.mxu0 0
        %924 = vmatpush1.bf16.msra.mxu0 %v901
        %925 = vmatprep.subr.bf16.mxu0 0
        %926 = vmatpush1.bf16.msra.mxu0 %v902
        %927 = vmatprep.subr.bf16.mxu0 0
        %928 = vmatpush1.bf16.msra.mxu0 0
        %929 = vmatprep.subr.bf16.mxu0 0
        %930 = vmatpush1.bf16.msra.mxu0 0
        %931 = vmatprep.subr.bf16.mxu0 0
        %932 = vmatpush1.bf16.msra.mxu0 0
        %933 = vmatprep.subr.bf16.mxu0 0
        %934 = vmatpush1.bf16.msra.mxu0 0
        %935 = vmatprep.subr.bf16.mxu0 0
        %936 = vmatpush1.bf16.msra.mxu0 0
        %937 = vmatprep.subr.bf16.mxu0 0
        %938 = vmatpush1.bf16.msra.mxu0 0
        %939 = vmatprep.subr.bf16.mxu0 0
        %940 = vmatpush1.bf16.msra.mxu0 0
        %941 = vmatprep.subr.bf16.mxu0 0
        %942 = vmatpush1.bf16.msra.mxu0 0
        %943 = vmatprep.mubr.bf16.mxu0 0
        %944 = vmatmul.mubr.bf16.gmra.mrb[0].mxu0 %v836
        %v945 = vpop.f32.mrb[0].mxu0
        %v946 = vadd.f32 %v861, %v945
        %v947 = vpop.f32.mrb[0].mxu0
        %v948 = vpop.f32.mrb[0].mxu0
        %v949 = vadd.f32 %v861, %v948
        %v950 = vpop.f32.mrb[0].mxu0
        %951 = vmatprep.mubr.bf16.mxu0 0
        %952 = vmatmul.mubr.bf16.gmra.mrb[0].mxu0 %v837
        %v953 = vpop.f32.mrb[0].mxu0
        %v954 = vadd.f32 %v861, %v953
        %v955 = vpop.f32.mrb[0].mxu0
        %v956 = vpop.f32.mrb[0].mxu0
        %v957 = vadd.f32 %v861, %v956
        %v958 = vpop.f32.mrb[0].mxu0
        %959 = vdwg.mxu0
        %s960 = scalar_lea.vmem %s9, 1
        %v961 = vld [vmem:[%s960] sm:$0x1]
        %s962 = scalar_lea.vmem %s10, 1
        %v963 = vld [vmem:[%s962] sm:$0x1]
        %964 = vadd.xlane.f32.xlu0 %v946
        %v965 = vpop.xlane.xlu0 %964
        %966 = vadd.xlane.f32.xlu0 %v949
        %v967 = vpop.xlane.xlu0 %966
        %968 = vadd.xlane.f32.xlu0 %v954
        %v969 = vpop.xlane.xlu0 %968
        %970 = vadd.xlane.f32.xlu0 %v957
        %v971 = vpop.xlane.xlu0 %970
        %v972 = vmul.f32 %v965, 0.015625
        %v973 = vmul.f32 %v967, 0.015625
        %v974 = vmul.f32 %v969, 0.015625
        %v975 = vmul.f32 %v971, 0.015625
        %v976 = vsub.f32 %v946, %v972
        %v977 = vsub.f32 %v949, %v973
        %v978 = vsub.f32 %v954, %v974
        %v979 = vsub.f32 %v957, %v975
        %v980 = vsel %vm583, %v976, 0.0
        %v981 = vsel %vm583, %v977, 0.0
        %v982 = vsel %vm583, %v978, 0.0
        %v983 = vsel %vm583, %v979, 0.0
        %v984 = vmul.f32 %v980, %v980
        %v985 = vmul.f32 %v981, %v981
        %v986 = vmul.f32 %v982, %v982
        %v987 = vmul.f32 %v983, %v983
        %988 = vadd.xlane.f32.xlu0 %v984
        %v989 = vpop.xlane.xlu0 %988
        %990 = vadd.xlane.f32.xlu0 %v985
        %v991 = vpop.xlane.xlu0 %990
        %992 = vadd.xlane.f32.xlu0 %v986
        %v993 = vpop.xlane.xlu0 %992
        %994 = vadd.xlane.f32.xlu0 %v987
        %v995 = vpop.xlane.xlu0 %994
        %v996 = vmul.f32 %v989, 0.015625
        %v997 = vmul.f32 %v991, 0.015625
        %v998 = vmul.f32 %v993, 0.015625
        %v999 = vmul.f32 %v995, 0.015625
        %v1000 = vadd.f32 %v996, 1e-05
        %v1001 = vadd.f32 %v997, 1e-05
        %v1002 = vadd.f32 %v998, 1e-05
        %v1003 = vadd.f32 %v999, 1e-05
        %v1004 = vrsqrt.pop %v1000
        %v1005 = vrsqrt.pop %v1001
        %v1006 = vrsqrt.pop %v1002
        %v1007 = vrsqrt.pop %v1003
        %v1008 = vmul.f32 %v980, %v1004
        %v1009 = vmul.f32 %v981, %v1005
        %v1010 = vmul.f32 %v982, %v1006
        %v1011 = vmul.f32 %v983, %v1007
        %v1013 = vlaneseq
        %v1014 = vshrl.u32 %v1013, 7
        %v1015 = vsub.s32 0, %v1014
        %v1016 = vrot.slane %v961, %v1015
        %v1018 = vmul.f32 %v1008, %v1016
        %v1019 = vmul.f32 %v1009, %v1016
        %v1020 = vmul.f32 %v1010, %v1016
        %v1021 = vmul.f32 %v1011, %v1016
        %v1023 = vlaneseq
        %v1024 = vshrl.u32 %v1023, 7
        %v1025 = vsub.s32 0, %v1024
        %v1026 = vrot.slane %v963, %v1025
        %v1028 = vadd.f32 %v1018, %v1026
        %v1029 = vadd.f32 %v1019, %v1026
        %v1030 = vadd.f32 %v1020, %v1026
        %v1031 = vadd.f32 %v1021, %v1026
        %v1032 = vmax.f32 %v1028, 0.0
        %v1033 = vmax.f32 %v1029, 0.0
        %v1034 = vmax.f32 %v1030, 0.0
        %v1035 = vmax.f32 %v1031, 0.0
        %v1036 = vpack.c.bf16 %v1033, %v1032
        %v1037 = vpack.c.bf16 %v1035, %v1034
        %v1040 = vunpack.c.l.b16 %v1036
        %v1041 = vunpack.c.h.b16 %v1036
        %v1042 = vunpack.c.l.b16 %v1037
        %v1043 = vunpack.c.h.b16 %v1037
        %v1044 = vpack.c.b16 %v1040, %v1040
        %v1045 = vpack.c.b16 %v1041, %v1041
        %v1046 = vpack.c.b16 %v1042, %v1042
        %v1047 = vpack.c.b16 %v1043, %v1043
        %1052 = vst [vmem:[%s395] sm:$0xf] %v1044
        %1053 = vst [vmem:[%s395 + $0x4] sm:$0xf] %v1045
        %1054 = vst [vmem:[%s395 + $0x8] sm:$0xf] %v1046
        %1055 = vst [vmem:[%s395 + $0xc] sm:$0xf] %v1047
        %s1056 = sand.u32 %s270, 1
        %s1057 = scalar_lea.sflag [#allocation4], %s1056
        %s1058 = sand.u32 %s270, 1
        %s1059 = smul.addr %s1058, 16
        %s1060 = scalar_lea.vmem [#allocation5], %s1059
        // Predicated region
        $region69: #{tpu_custom_call.1} parent=63 // pred_check
          %p1061 = pneg %p280
        $region70: #{tpu_custom_call.1} parent=63 // pred_check_branch
          %1063 = sbr.rel (%p1061) target = $region72
        $region71: #{tpu_custom_call.1} parent=63 // pred_region
          %s1064 = smul.u32 4, %s26
          %s1066 = ssub.s32 256, 256
          %1067 = vsyncadd %s1057, %s1066
          %s1068 = smul.addr %s1064, 64
          %s1069 = scalar_lea.hbm %s11, %s1068
          %s1070 = sshll.u32 %s1060, 4
          %s1071 = int_to_ptr.vmem [resolvable:$true] %s1070
          %1076 = dma.vmem_to_hbm [thread:$0]  %s1071, 256, %s1069, %s1057, 64, 64, 4
        $region72: #{tpu_custom_call.1} parent=63 // pred_fallthru
          _
      $region64: #{tpu_custom_call.1} parent=5 // pred_fallthru
        _
      %p1077 = scmp.le.s32.totalorder 2, %s21
      // Predicated region
      $region73: #{tpu_custom_call.1} parent=5 // pred_check
        %p1078 = pneg %p1077
      $region74: #{tpu_custom_call.1} parent=5 // pred_check_branch
        %1080 = sbr.rel (%p1078) target = $region76
      $region75: #{tpu_custom_call.1} parent=5 // pred_region
        %s1081 = ssub.s32 %s21, 2
        // Predicated region
        $region77: #{tpu_custom_call.1} parent=75 // pred_check
          %p1082 = pneg %p286
        $region78: #{tpu_custom_call.1} parent=75 // pred_check_branch
          %1084 = sbr.rel (%p1082) target = $region80
        $region79: #{tpu_custom_call.1} parent=75 // pred_region
          %s1085 = sand.u32 %s271, 1
          %s1086 = scalar_lea.sflag [#allocation4], %s1085
          %s1087 = sand.u32 %s271, 1
          %s1088 = smul.addr %s1087, 16
          %s1089 = scalar_lea.vmem [#allocation5], %s1088
          %1090 = dma.done %s1086, 256
        $region80: #{tpu_custom_call.1} parent=75 // pred_fallthru
          _
      $region76: #{tpu_custom_call.1} parent=5 // pred_fallthru
        _
    $region6: #{tpu_custom_call.1} parent=1 // loop_footer
      %s25 = sadd.s32 1, %s21
    $region7: #{tpu_custom_call.1} parent=1 // loop_footer_branch
      %20 = sbr.rel target = $region3
    $region8: #{tpu_custom_call.1} parent=1 // loop_exit
      _
    %1091 = vsyncpa [#allocation3], 1
    %s1092 = scalar_lea.sflag [#allocation3], 1
    %1093 = vsyncpa %s1092, 1
    %1094 = vsyncpa [#allocation4], 1
    %s1095 = scalar_lea.sflag [#allocation4], 1
    %1096 = vsyncpa %s1095, 1

</llo_original>
